<compile_context>
chip_gen: v7x
topology: tpu7x:2x2x1
jax: 0.10.0
libtpu: 0.0.40
codegen_flags: <defaults>
</compile_context>

<pallas_src>
import functools

import jax
import jax.numpy as jnp
from jax.experimental import pallas as pl
from jax.experimental.pallas import tpu as pltpu

LANES = 128          # lane width (fixed by hardware)
MAX_ROW_TILE = 512   # rows (of 128 boxes) per grid step; 4*512*128*4B = 1 MiB/block
                     # -> double-buffered footprint ~4.5 MiB, safe even under
                     #    v5e's 16 MiB scoped-VMEM default and v7x's 64 MiB VMEM.


def _round_up(x, m):
    return ((x + m - 1) // m) * m


def _iou_loss_kernel(pred_ref, tgt_ref, loss_ref, *, loss_type):
    # pred_ref / tgt_ref : (4, R, 128)  planes = cx, cy, w, h
    # loss_ref           : (R, 128)
    p = pred_ref[...]
    t = tgt_ref[...]

    p_xy, p_wh = p[0:2], p[2:4]          # (2, R, 128) each
    t_xy, t_wh = t[0:2], t[2:4]

    # hoisted half-sizes, shared by the iou and giou corner computations
    p_half = p_wh * 0.5
    t_half = t_wh * 0.5
    p_tl = p_xy - p_half
    p_br = p_xy + p_half
    t_tl = t_xy - t_half
    t_br = t_xy + t_half

    # intersection corners (x and y computed together as a (2, R, 128) op)
    tl = jnp.maximum(p_tl, t_tl)
    br = jnp.minimum(p_br, t_br)

    area_p = p_wh[0] * p_wh[1]           # (R, 128)
    area_g = t_wh[0] * t_wh[1]

    wh = br - tl
    en = ((tl[0] < br[0]) & (tl[1] < br[1])).astype(area_p.dtype)
    area_i = wh[0] * wh[1] * en
    area_u = area_p + area_g - area_i
    # exact divide kept (loss value); EUP approx reciprocal not needed since
    # the kernel is DMA-bound after the tiling fix.
    iou = area_i / (area_u + 1e-16)

    if loss_type == "iou":
        loss = 1.0 - iou * iou
    elif loss_type == "giou":
        # enclosing box reuses the precomputed corner tensors
        c_wh = jnp.maximum(p_br, t_br) - jnp.minimum(p_tl, t_tl)
        area_c = c_wh[0] * c_wh[1]
        giou = iou - (area_c - area_u) / jnp.maximum(area_c, 1e-16)
        loss = 1.0 - jnp.clip(giou, -1.0, 1.0)
    else:
        raise ValueError(f"unknown loss_type {loss_type}")

    loss_ref[...] = loss


def iou_loss(pred, target, reduction="none", loss_type="iou"):
    """Pallas implementation of YOLO-X IOUloss.forward."""
    assert pred.shape[0] == target.shape[0]
    pred = pred.reshape(-1, 4).astype(jnp.float32)
    target = target.reshape(-1, 4).astype(jnp.float32)
    n = pred.shape[0]

    # choose a row-tile: ~512 rows of 128 boxes for large inputs, but shrink
    # (multiple of 8 sublanes) for small ones so we don't over-pad.
    rows_needed = max(1, pl.cdiv(n, LANES))
    row_tile = min(MAX_ROW_TILE, _round_up(rows_needed, 8))
    n_rows = _round_up(rows_needed, row_tile)
    n_pad = n_rows * LANES

    # single fused pad + transpose + reshape to the planar (4, n_rows, 128)
    # layout (no zeros+scatter round-trip).
    def to_planar(x):
        return jnp.pad(x, ((0, n_pad - n), (0, 0))).T.reshape(4, n_rows, LANES)

    pred_t = to_planar(pred)
    tgt_t = to_planar(target)

    kernel = functools.partial(_iou_loss_kernel, loss_type=loss_type)
    out = pl.pallas_call(
        kernel,
        out_shape=jax.ShapeDtypeStruct((n_rows, LANES), jnp.float32),
        grid_spec=pltpu.PrefetchScalarGridSpec(
            num_scalar_prefetch=0,
            grid=(n_rows // row_tile,),
            in_specs=[
                pl.BlockSpec((4, row_tile, LANES), lambda i: (0, i, 0)),
                pl.BlockSpec((4, row_tile, LANES), lambda i: (0, i, 0)),
            ],
            out_specs=pl.BlockSpec((row_tile, LANES), lambda i: (i, 0)),
        ),
        compiler_params=pltpu.CompilerParams(
            dimension_semantics=("parallel",)
        ),
    )(pred_t, tgt_t)

    loss = out.reshape(-1)[:n]  # (N,)

    # TODO(synk): for reduction != 'none' the partial sums could be fused into
    # the kernel with an SMEM accumulator; kept in XLA since it is a small win.
    if reduction == "mean":
        loss = loss.mean()
    elif reduction == "sum":
        loss = loss.sum()
    return loss


def _iou_loss_ref(pred, target, reduction="none", loss_type="iou"):
    """Pure-JAX reference mirroring the PyTorch module."""
    pred = pred.reshape(-1, 4).astype(jnp.float32)
    target = target.reshape(-1, 4).astype(jnp.float32)
    tl = jnp.maximum(pred[:, :2] - pred[:, 2:] / 2, target[:, :2] - target[:, 2:] / 2)
    br = jnp.minimum(pred[:, :2] + pred[:, 2:] / 2, target[:, :2] + target[:, 2:] / 2)
    area_p = jnp.prod(pred[:, 2:], 1)
    area_g = jnp.prod(target[:, 2:], 1)
    en = jnp.prod((tl < br).astype(tl.dtype), axis=1)
    area_i = jnp.prod(br - tl, 1) * en
    area_u = area_p + area_g - area_i
    iou = area_i / (area_u + 1e-16)
    if loss_type == "iou":
        loss = 1 - iou ** 2
    else:
        c_tl = jnp.minimum(pred[:, :2] - pred[:, 2:] / 2, target[:, :2] - target[:, 2:] / 2)
        c_br = jnp.maximum(pred[:, :2] + pred[:, 2:] / 2, target[:, :2] + target[:, 2:] / 2)
        area_c = jnp.prod(c_br - c_tl, 1)
        giou = iou - (area_c - area_u) / jnp.maximum(area_c, 1e-16)
        loss = 1 - jnp.clip(giou, -1.0, 1.0)
    if reduction == "mean":
        loss = loss.mean()
    elif reduction == "sum":
        loss = loss.sum()
    return loss


if __name__ == "__main__":
    key = jax.random.PRNGKey(0)
    k1, k2, k3, k4 = jax.random.split(key, 4)
    n_boxes = 8

    # boxes in (cx, cy, w, h) with positive w, h
    pred = jnp.concatenate(
        [jax.random.uniform(k1, (n_boxes, 2)) * 16.0,
         jax.random.uniform(k2, (n_boxes, 2)) * 8.0 + 0.5], axis=1)
    target = jnp.concatenate(
        [jax.random.uniform(k3, (n_boxes, 2)) * 16.0,
         jax.random.uniform(k4, (n_boxes, 2)) * 8.0 + 0.5], axis=1)

    ok = True
    for loss_type in ("iou", "giou"):
        for reduction in ("none", "mean", "sum"):
            out = iou_loss(pred, target, reduction=reduction, loss_type=loss_type)
            out = jax.block_until_ready(out)
            ref = _iou_loss_ref(pred, target, reduction=reduction, loss_type=loss_type)
            if not jnp.allclose(out, ref, atol=1e-5, rtol=1e-5):
                ok = False

    if ok:
        print("KERNEL_OK")
    else:
        print("KERNEL_MISMATCH")
</pallas_src>

<mosaic_0001>
module attributes {stable_mosaic.version = 11 : i64} {
  func.func @_iou_loss_kernel(%arg0: i32, %arg1: memref<4x8x128xf32, #tpu.memory_space<vmem>>, %arg2: memref<4x8x128xf32, #tpu.memory_space<vmem>>, %arg3: memref<8x128xf32, #tpu.memory_space<vmem>>) attributes {dimension_semantics = [#tpu.dimension_semantics<parallel>], iteration_bounds = array<i64: 1>, scalar_prefetch = 0 : i64, scratch_operands = 0 : i64, tpu.core_type = #tpu.core_type<tc>, window_params = [{transform_indices = @transform_0, window_bounds = array<i64: 4, 8, 128>}, {transform_indices = @transform_1, window_bounds = array<i64: 4, 8, 128>}, {transform_indices = @transform_2, window_bounds = array<i64: 8, 128>}]} {
    %c0 = arith.constant 0 : index
    %c0_0 = arith.constant 0 : index
    %c0_1 = arith.constant 0 : index
    %0 = vector.load %arg1[%c0, %c0_0, %c0_1] : memref<4x8x128xf32, #tpu.memory_space<vmem>>, vector<4x8x128xf32>
    %c0_2 = arith.constant 0 : index
    %c0_3 = arith.constant 0 : index
    %c0_4 = arith.constant 0 : index
    %1 = vector.load %arg2[%c0_2, %c0_3, %c0_4] : memref<4x8x128xf32, #tpu.memory_space<vmem>>, vector<4x8x128xf32>
    %2 = vector.extract_strided_slice %0 {offsets = [0, 0, 0], sizes = [2, 8, 128], strides = [1, 1, 1]} : vector<4x8x128xf32> to vector<2x8x128xf32>
    %3 = vector.extract_strided_slice %0 {offsets = [2, 0, 0], sizes = [2, 8, 128], strides = [1, 1, 1]} : vector<4x8x128xf32> to vector<2x8x128xf32>
    %4 = vector.extract_strided_slice %1 {offsets = [0, 0, 0], sizes = [2, 8, 128], strides = [1, 1, 1]} : vector<4x8x128xf32> to vector<2x8x128xf32>
    %5 = vector.extract_strided_slice %1 {offsets = [2, 0, 0], sizes = [2, 8, 128], strides = [1, 1, 1]} : vector<4x8x128xf32> to vector<2x8x128xf32>
    %cst = arith.constant 5.000000e-01 : f32
    %6 = vector.broadcast %cst : f32 to vector<2x8x128xf32>
    %7 = arith.mulf %3, %6 : vector<2x8x128xf32>
    %cst_5 = arith.constant 5.000000e-01 : f32
    %8 = vector.broadcast %cst_5 : f32 to vector<2x8x128xf32>
    %9 = arith.mulf %5, %8 : vector<2x8x128xf32>
    %10 = arith.subf %2, %7 : vector<2x8x128xf32>
    %11 = arith.addf %2, %7 : vector<2x8x128xf32>
    %12 = arith.subf %4, %9 : vector<2x8x128xf32>
    %13 = arith.addf %4, %9 : vector<2x8x128xf32>
    %14 = arith.maximumf %10, %12 : vector<2x8x128xf32>
    %15 = arith.minimumf %11, %13 : vector<2x8x128xf32>
    %16 = vector.extract_strided_slice %3 {offsets = [0, 0, 0], sizes = [1, 8, 128], strides = [1, 1, 1]} : vector<2x8x128xf32> to vector<1x8x128xf32>
    %17 = vector.shape_cast %16 : vector<1x8x128xf32> to vector<8x128xf32>
    %18 = vector.extract_strided_slice %3 {offsets = [1, 0, 0], sizes = [1, 8, 128], strides = [1, 1, 1]} : vector<2x8x128xf32> to vector<1x8x128xf32>
    %19 = vector.shape_cast %18 : vector<1x8x128xf32> to vector<8x128xf32>
    %20 = arith.mulf %17, %19 : vector<8x128xf32>
    %21 = vector.extract_strided_slice %5 {offsets = [0, 0, 0], sizes = [1, 8, 128], strides = [1, 1, 1]} : vector<2x8x128xf32> to vector<1x8x128xf32>
    %22 = vector.shape_cast %21 : vector<1x8x128xf32> to vector<8x128xf32>
    %23 = vector.extract_strided_slice %5 {offsets = [1, 0, 0], sizes = [1, 8, 128], strides = [1, 1, 1]} : vector<2x8x128xf32> to vector<1x8x128xf32>
    %24 = vector.shape_cast %23 : vector<1x8x128xf32> to vector<8x128xf32>
    %25 = arith.mulf %22, %24 : vector<8x128xf32>
    %26 = arith.subf %15, %14 : vector<2x8x128xf32>
    %27 = vector.extract_strided_slice %14 {offsets = [0, 0, 0], sizes = [1, 8, 128], strides = [1, 1, 1]} : vector<2x8x128xf32> to vector<1x8x128xf32>
    %28 = vector.shape_cast %27 : vector<1x8x128xf32> to vector<8x128xf32>
    %29 = vector.extract_strided_slice %15 {offsets = [0, 0, 0], sizes = [1, 8, 128], strides = [1, 1, 1]} : vector<2x8x128xf32> to vector<1x8x128xf32>
    %30 = vector.shape_cast %29 : vector<1x8x128xf32> to vector<8x128xf32>
    %31 = arith.cmpf olt, %28, %30 : vector<8x128xf32>
    %32 = vector.extract_strided_slice %14 {offsets = [1, 0, 0], sizes = [1, 8, 128], strides = [1, 1, 1]} : vector<2x8x128xf32> to vector<1x8x128xf32>
    %33 = vector.shape_cast %32 : vector<1x8x128xf32> to vector<8x128xf32>
    %34 = vector.extract_strided_slice %15 {offsets = [1, 0, 0], sizes = [1, 8, 128], strides = [1, 1, 1]} : vector<2x8x128xf32> to vector<1x8x128xf32>
    %35 = vector.shape_cast %34 : vector<1x8x128xf32> to vector<8x128xf32>
    %36 = arith.cmpf olt, %33, %35 : vector<8x128xf32>
    %37 = arith.andi %31, %36 : vector<8x128xi1>
    %38 = arith.extui %37 : vector<8x128xi1> to vector<8x128xi32>
    %39 = arith.sitofp %38 : vector<8x128xi32> to vector<8x128xf32>
    %40 = vector.extract_strided_slice %26 {offsets = [0, 0, 0], sizes = [1, 8, 128], strides = [1, 1, 1]} : vector<2x8x128xf32> to vector<1x8x128xf32>
    %41 = vector.shape_cast %40 : vector<1x8x128xf32> to vector<8x128xf32>
    %42 = vector.extract_strided_slice %26 {offsets = [1, 0, 0], sizes = [1, 8, 128], strides = [1, 1, 1]} : vector<2x8x128xf32> to vector<1x8x128xf32>
    %43 = vector.shape_cast %42 : vector<1x8x128xf32> to vector<8x128xf32>
    %44 = arith.mulf %41, %43 : vector<8x128xf32>
    %45 = arith.mulf %44, %39 : vector<8x128xf32>
    %46 = arith.addf %20, %25 : vector<8x128xf32>
    %47 = arith.subf %46, %45 : vector<8x128xf32>
    %cst_6 = arith.constant 1.000000e-16 : f32
    %48 = vector.broadcast %cst_6 : f32 to vector<8x128xf32>
    %49 = arith.addf %47, %48 : vector<8x128xf32>
    %50 = arith.divf %45, %49 : vector<8x128xf32>
    %51 = arith.mulf %50, %50 : vector<8x128xf32>
    %cst_7 = arith.constant 1.000000e+00 : f32
    %52 = vector.broadcast %cst_7 : f32 to vector<8x128xf32>
    %53 = arith.subf %52, %51 : vector<8x128xf32>
    %c0_8 = arith.constant 0 : index
    %c0_9 = arith.constant 0 : index
    %54 = vector.load %arg3[%c0_8, %c0_9] : memref<8x128xf32, #tpu.memory_space<vmem>>, vector<8x128xf32>
    tpu.vector_store %arg3[%c0_8, %c0_9], %53 {strides = array<i32>} : memref<8x128xf32, #tpu.memory_space<vmem>>, vector<8x128xf32>,
    return
  }
  func.func @transform_0(%arg0: i32) -> (i32, i32, i32) {
    %c0_i32 = arith.constant 0 : i32
    %c0_i32_0 = arith.constant 0 : i32
    %c0_i32_1 = arith.constant 0 : i32
    return %c0_i32, %arg0, %c0_i32_0 : i32, i32, i32
  }
  func.func @transform_1(%arg0: i32) -> (i32, i32, i32) {
    %c0_i32 = arith.constant 0 : i32
    %c0_i32_0 = arith.constant 0 : i32
    %c0_i32_1 = arith.constant 0 : i32
    return %c0_i32, %arg0, %c0_i32_0 : i32, i32, i32
  }
  func.func @transform_2(%arg0: i32) -> (i32, i32) {
    %c0_i32 = arith.constant 0 : i32
    %c0_i32_0 = arith.constant 0 : i32
    return %arg0, %c0_i32 : i32, i32
  }
}

</mosaic_0001>

<llo_original>
// kernel: tpu_custom_call.1
$region0: #{tpu_custom_call.1}
  #allocation0 [shape = 'u32[]', space=smem, size = 0x4, offset = 0x4, fixed_abs, tag = 'smem constant byte address 0x4 - core index']
  #allocation1 [shape = 'u32[144,128]{1,0:T(1,128)}', space=vmem, size = 0x12000, scoped, tag = 'internal scratch']
  %s0 = inlined_call_operand.hbm [shape: f32[4,8,128], index: 0, kind: input, shape index: {}]
  %s1 = inlined_call_operand.hbm [shape: f32[4,8,128], index: 1, kind: input, shape index: {}]
  %s2 = inlined_call_operand.hbm [shape: f32[8,128], index: 2, kind: output, shape index: {}]
  %s3 = sld [smem:[#allocation0]]
  $region26: #{tpu_custom_call.1} parent=0
    _
  %s5 = ssub.s32 1, %s3
  %s6 = scalar_select 0, %s5, %s3
  $region1: #{tpu_custom_call.1} parent=0
    #allocation2 [shape = 'u8[16384]{0}', space=vmem, size = 0x4000, scoped, tag = 'input window, operand 0, single buffered']
    #allocation3 [shape = 's32[1]{0}', space=sflag, size = 0x4, scoped, tag = 'scoped memory for tpu_custom_call.1']
    #allocation4 [shape = 's32[1]{0}', space=sflag, size = 0x4, scoped, tag = 'scoped memory for tpu_custom_call.1']
    #allocation5 [shape = 'u8[16384]{0}', space=vmem, size = 0x4000, scoped, tag = 'input window, operand 1, single buffered']
    #allocation6 [shape = 's32[1]{0}', space=sflag, size = 0x4, scoped, tag = 'scoped memory for tpu_custom_call.1']
    #allocation7 [shape = 'u8[4096]{0}', space=vmem, size = 0x1000, scoped, tag = 'output window, operand 0, single buffered']
    %7 = vsyncpa [#allocation3], 0
    %8 = vsyncpa [#allocation6], 0
    %9 = vsyncpa [#allocation4], 0
    // Predicated region
    $region2: #{tpu_custom_call.1} parent=1 // pred_check
      _
    $region3: #{tpu_custom_call.1} parent=1 // pred_check_branch
      %11 = sbr.rel (0) target = $region5
    $region4: #{tpu_custom_call.1} parent=1 // pred_region
      %s13 = ssub.s32 512, 512
      %14 = vsyncadd [#allocation3], %s13
      %s15 = sshll.u32 [#allocation2], 4
      %s16 = int_to_ptr.vmem [resolvable:$true] %s15
      %21 = dma.hbm_to_vmem [thread:$0]  %s0, 512, %s16, [#allocation3], 128, 128, 8
    $region5: #{tpu_custom_call.1} parent=1 // pred_fallthru
      _
    // Predicated region
    $region6: #{tpu_custom_call.1} parent=1 // pred_check
      _
    $region7: #{tpu_custom_call.1} parent=1 // pred_check_branch
      %23 = sbr.rel (0) target = $region9
    $region8: #{tpu_custom_call.1} parent=1 // pred_region
      %s25 = ssub.s32 512, 512
      %26 = vsyncadd [#allocation6], %s25
      %s27 = sshll.u32 [#allocation5], 4
      %s28 = int_to_ptr.vmem [resolvable:$true] %s27
      %33 = dma.hbm_to_vmem [thread:$0]  %s1, 512, %s28, [#allocation6], 128, 128, 8
    $region9: #{tpu_custom_call.1} parent=1 // pred_fallthru
      _
    // Predicated region
    $region10: #{tpu_custom_call.1} parent=1 // pred_check
      _
    $region11: #{tpu_custom_call.1} parent=1 // pred_check_branch
      %35 = sbr.rel (0) target = $region13
    $region12: #{tpu_custom_call.1} parent=1 // pred_region
      %36 = dma.done [#allocation3], 512
    $region13: #{tpu_custom_call.1} parent=1 // pred_fallthru
      _
    // Predicated region
    $region14: #{tpu_custom_call.1} parent=1 // pred_check
      _
    $region15: #{tpu_custom_call.1} parent=1 // pred_check_branch
      %38 = sbr.rel (0) target = $region17
    $region16: #{tpu_custom_call.1} parent=1 // pred_region
      %39 = dma.done [#allocation6], 512
    $region17: #{tpu_custom_call.1} parent=1 // pred_fallthru
      _
    %v40 = vld [vmem:[#allocation2] sm:$0xff]
    %v41 = vld [vmem:[#allocation2 + $0x8] sm:$0xff]
    %v42 = vld [vmem:[#allocation2 + $0x10] sm:$0xff]
    %v43 = vld [vmem:[#allocation2 + $0x18] sm:$0xff]
    %v44 = vld [vmem:[#allocation5] sm:$0xff]
    %v45 = vld [vmem:[#allocation5 + $0x8] sm:$0xff]
    %v46 = vld [vmem:[#allocation5 + $0x10] sm:$0xff]
    %v47 = vld [vmem:[#allocation5 + $0x18] sm:$0xff]
    %v48 = vmul.f32 %v42, 0.5
    %v49 = vmul.f32 %v43, 0.5
    %v50 = vmul.f32 %v46, 0.5
    %v51 = vmul.f32 %v47, 0.5
    %v52 = vsub.f32 %v40, %v48
    %v53 = vsub.f32 %v41, %v49
    %v54 = vadd.f32 %v40, %v48
    %v55 = vadd.f32 %v41, %v49
    %v56 = vsub.f32 %v44, %v50
    %v57 = vsub.f32 %v45, %v51
    %v58 = vadd.f32 %v44, %v50
    %v59 = vadd.f32 %v45, %v51
    %v60 = vmax.f32 %v52, %v56
    %v61 = vmax.f32 %v53, %v57
    %v62 = vmin.f32 %v54, %v58
    %v63 = vmin.f32 %v55, %v59
    %v64 = vmul.f32 %v42, %v43
    %v65 = vmul.f32 %v46, %v47
    %v66 = vsub.f32 %v62, %v60
    %v67 = vsub.f32 %v63, %v61
    %vm68 = vcmp.lt.f32.partialorder %v60, %v62
    %vm69 = vcmp.lt.f32.partialorder %v61, %v63
    %vm70 = vmand %vm68, %vm69
    %v71 = vsel %vm70, 1, 0
    %v72 = vcvt.s32.f32 %v71
    %v73 = vmul.f32 %v66, %v67
    %v74 = vmul.f32 %v73, %v72
    %v75 = vadd.f32 %v64, %v65
    %v76 = vsub.f32 %v75, %v74
    %v77 = vadd.f32 %v76, 1e-16
    %v78 = vrcp.pop %v77
    %v79 = vmul.f32 %v74, %v78
    %v80 = vmul.f32 %v79, %v79
    %v81 = vsub.f32 1.0, %v80
    %82 = vst [vmem:[#allocation7] sm:$0xff] %v81
    // Predicated region
    $region18: #{tpu_custom_call.1} parent=1 // pred_check
      _
    $region19: #{tpu_custom_call.1} parent=1 // pred_check_branch
      %84 = sbr.rel (0) target = $region21
    $region20: #{tpu_custom_call.1} parent=1 // pred_region
      %s86 = ssub.s32 128, 128
      %87 = vsyncadd [#allocation4], %s86
      %s89 = sshll.u32 [#allocation7], 4
      %s90 = int_to_ptr.vmem [resolvable:$true] %s89
      %92 = dma.vmem_to_hbm [thread:$0]  %s90, 128, %s2, [#allocation4]
    $region21: #{tpu_custom_call.1} parent=1 // pred_fallthru
      _
    // Predicated region
    $region22: #{tpu_custom_call.1} parent=1 // pred_check
      _
    $region23: #{tpu_custom_call.1} parent=1 // pred_check_branch
      %94 = sbr.rel (0) target = $region25
    $region24: #{tpu_custom_call.1} parent=1 // pred_region
      %95 = dma.done [#allocation4], 128
    $region25: #{tpu_custom_call.1} parent=1 // pred_fallthru
      _
    %96 = vsyncpa [#allocation3], 1
    %97 = vsyncpa [#allocation6], 1
    %98 = vsyncpa [#allocation4], 1

</llo_original>
